<compile_context>
chip_gen: v7x
topology: tpu7x:2x2x1
jax: 0.10.0
libtpu: 0.0.40
codegen_flags: <defaults>
</compile_context>

<pallas_src>
import functools

import jax
import jax.numpy as jnp
from jax.experimental import pallas as pl
from jax.experimental.pallas import tpu as pltpu

LANES = 128
ROW_TILE_MAX = 1024  # 1024 x 128 x 4 B = 512 KiB per f32 input block


def _tanh_l1_partial_kernel(x_ref, y_ref, o_ref, *, row_tile, rows_valid,
                            needs_mask):
    # x_ref / y_ref: (row_tile, LANES) input tiles.
    # o_ref:         (1, 8, LANES) per-block partial sum (f32).
    xf = x_ref[...].astype(jnp.float32)
    yf = y_ref[...].astype(jnp.float32)
    diff = jnp.abs(jnp.tanh(xf) - jnp.tanh(yf))

    if needs_mask:
        # Only the last (partial) block has invalid rows; the compare+select is
        # cheap VPU work and correct (all-true) for full blocks.
        base = pl.program_id(0) * row_tile
        row_ids = jax.lax.broadcasted_iota(jnp.int32, (row_tile, LANES), 0) + base
        diff = jnp.where(row_ids < rows_valid, diff, 0.0)

    # Fold rows in groups of 8 (whole vreg tiles): plain VPU adds only, no
    # cross-lane/sublane (XLU) reduction inside the kernel.
    folded = jnp.sum(diff.reshape(row_tile // 8, 8, LANES), axis=0)
    o_ref[...] = folded[None]


def tanh_l1_loss(x, y):
    assert x.shape == y.shape, "x and y must have the same shape"
    n_elems = x.size

    xf = jnp.ravel(x)
    yf = jnp.ravel(y)

    if n_elems % LANES != 0:
        # TODO(synk): lane-alignment fallback pays a full pad copy; could be
        # split into an aligned main kernel + tiny pure-JAX tail instead.
        pad = LANES - n_elems % LANES
        xf = jnp.pad(xf, (0, pad))
        yf = jnp.pad(yf, (0, pad))

    rows = xf.shape[0] // LANES
    x2d = xf.reshape(rows, LANES)
    y2d = yf.reshape(rows, LANES)

    # Row tile: multiple of 8, capped at ROW_TILE_MAX, never larger than needed.
    row_tile = min(ROW_TILE_MAX, ((rows + 7) // 8) * 8)
    num_blocks = pl.cdiv(rows, row_tile)
    needs_mask = (rows % row_tile) != 0

    kernel = functools.partial(
        _tanh_l1_partial_kernel,
        row_tile=row_tile,
        rows_valid=rows,
        needs_mask=needs_mask,
    )

    partials = pl.pallas_call(
        kernel,
        out_shape=jax.ShapeDtypeStruct((num_blocks, 8, LANES), jnp.float32),
        grid=(num_blocks,),
        in_specs=[
            pl.BlockSpec((row_tile, LANES), lambda i: (i, 0)),
            pl.BlockSpec((row_tile, LANES), lambda i: (i, 0)),
        ],
        out_specs=pl.BlockSpec((1, 8, LANES), lambda i: (i, 0, 0)),
        compiler_params=pltpu.CompilerParams(
            dimension_semantics=("parallel",),
        ),
    )(x2d, y2d)

    # Single tiny cross-lane reduction outside the kernel.
    return jnp.sum(partials) / jnp.float32(n_elems)


if __name__ == "__main__":
    key = jax.random.PRNGKey(0)
    kx, ky = jax.random.split(key)
    # NCHW, same convention as the PyTorch module's inputs.
    x = jax.random.normal(kx, (2, 4, 16, 16), dtype=jnp.float32)
    y = jax.random.normal(ky, (2, 4, 16, 16), dtype=jnp.float32)

    loss = jax.block_until_ready(tanh_l1_loss(x, y))

    # Pure-JAX reference check.
    ref = jnp.mean(jnp.abs(jnp.tanh(x) - jnp.tanh(y)))
    assert jnp.allclose(loss, ref, rtol=1e-5, atol=1e-6), (loss, ref)

    print("KERNEL_OK")
</pallas_src>

<mosaic_0001>
module attributes {stable_mosaic.version = 11 : i64} {
  func.func @_tanh_l1_partial_kernel(%arg0: i32, %arg1: memref<16x128xf32, #tpu.memory_space<vmem>>, %arg2: memref<16x128xf32, #tpu.memory_space<vmem>>, %arg3: memref<1x8x128xf32, #tpu.memory_space<vmem>>) attributes {dimension_semantics = [#tpu.dimension_semantics<parallel>], iteration_bounds = array<i64: 1>, scalar_prefetch = 0 : i64, scratch_operands = 0 : i64, tpu.core_type = #tpu.core_type<tc>, window_params = [{transform_indices = @transform_0, window_bounds = array<i64: 16, 128>}, {transform_indices = @transform_1, window_bounds = array<i64: 16, 128>}, {transform_indices = @transform_2, window_bounds = array<i64: 1, 8, 128>}]} {
    %c0 = arith.constant 0 : index
    %c0_0 = arith.constant 0 : index
    %0 = vector.load %arg1[%c0, %c0_0] : memref<16x128xf32, #tpu.memory_space<vmem>>, vector<16x128xf32>
    %c0_1 = arith.constant 0 : index
    %c0_2 = arith.constant 0 : index
    %1 = vector.load %arg2[%c0_1, %c0_2] : memref<16x128xf32, #tpu.memory_space<vmem>>, vector<16x128xf32>
    %2 = math.tanh %0 : vector<16x128xf32>
    %3 = math.tanh %1 : vector<16x128xf32>
    %4 = arith.subf %2, %3 : vector<16x128xf32>
    %5 = math.absf %4 : vector<16x128xf32>
    %6 = vector.shape_cast %5 : vector<16x128xf32> to vector<2x8x128xf32>
    %cst = arith.constant dense<0.000000e+00> : vector<8x128xf32>
    %7 = vector.multi_reduction <add>, %6, %cst [0] : vector<2x8x128xf32> to vector<8x128xf32>
    %8 = vector.shape_cast %7 : vector<8x128xf32> to vector<1x8x128xf32>
    %c0_3 = arith.constant 0 : index
    %c0_4 = arith.constant 0 : index
    %c0_5 = arith.constant 0 : index
    %9 = vector.load %arg3[%c0_3, %c0_4, %c0_5] : memref<1x8x128xf32, #tpu.memory_space<vmem>>, vector<1x8x128xf32>
    tpu.vector_store %arg3[%c0_3, %c0_4, %c0_5], %8 {strides = array<i32>} : memref<1x8x128xf32, #tpu.memory_space<vmem>>, vector<1x8x128xf32>,
    return
  }
  func.func @transform_0(%arg0: i32) -> (i32, i32) {
    %c0_i32 = arith.constant 0 : i32
    %c0_i32_0 = arith.constant 0 : i32
    return %arg0, %c0_i32 : i32, i32
  }
  func.func @transform_1(%arg0: i32) -> (i32, i32) {
    %c0_i32 = arith.constant 0 : i32
    %c0_i32_0 = arith.constant 0 : i32
    return %arg0, %c0_i32 : i32, i32
  }
  func.func @transform_2(%arg0: i32) -> (i32, i32, i32) {
    %c0_i32 = arith.constant 0 : i32
    %c0_i32_0 = arith.constant 0 : i32
    %c0_i32_1 = arith.constant 0 : i32
    return %arg0, %c0_i32, %c0_i32_0 : i32, i32, i32
  }
}

</mosaic_0001>

<llo_original>
// kernel: tpu_custom_call.1
$region0: #{tpu_custom_call.1}
  #allocation0 [shape = 'u32[]', space=smem, size = 0x4, offset = 0x4, fixed_abs, tag = 'smem constant byte address 0x4 - core index']
  #allocation1 [shape = 'u32[144,128]{1,0:T(1,128)}', space=vmem, size = 0x12000, scoped, tag = 'internal scratch']
  %s0 = inlined_call_operand.hbm [shape: f32[16,128], index: 0, kind: input, shape index: {}]
  %s1 = inlined_call_operand.hbm [shape: f32[16,128], index: 1, kind: input, shape index: {}]
  %s2 = inlined_call_operand.hbm [shape: f32[1,8,128], index: 2, kind: output, shape index: {}]
  %s3 = sld [smem:[#allocation0]]
  $region26: #{tpu_custom_call.1} parent=0
    _
  %s5 = ssub.s32 1, %s3
  %s6 = scalar_select 0, %s5, %s3
  $region1: #{tpu_custom_call.1} parent=0
    #allocation2 [shape = 'u8[8192]{0}', space=vmem, size = 0x2000, scoped, tag = 'input window, operand 0, single buffered']
    #allocation3 [shape = 's32[1]{0}', space=sflag, size = 0x4, scoped, tag = 'scoped memory for tpu_custom_call.1']
    #allocation4 [shape = 's32[1]{0}', space=sflag, size = 0x4, scoped, tag = 'scoped memory for tpu_custom_call.1']
    #allocation5 [shape = 'u8[8192]{0}', space=vmem, size = 0x2000, scoped, tag = 'input window, operand 1, single buffered']
    #allocation6 [shape = 's32[1]{0}', space=sflag, size = 0x4, scoped, tag = 'scoped memory for tpu_custom_call.1']
    #allocation7 [shape = 'u8[4096]{0}', space=vmem, size = 0x1000, scoped, tag = 'output window, operand 0, single buffered']
    %7 = vsyncpa [#allocation3], 0
    %8 = vsyncpa [#allocation6], 0
    %9 = vsyncpa [#allocation4], 0
    // Predicated region
    $region2: #{tpu_custom_call.1} parent=1 // pred_check
      _
    $region3: #{tpu_custom_call.1} parent=1 // pred_check_branch
      %11 = sbr.rel (0) target = $region5
    $region4: #{tpu_custom_call.1} parent=1 // pred_region
      %s13 = ssub.s32 256, 256
      %14 = vsyncadd [#allocation3], %s13
      %s15 = sshll.u32 [#allocation2], 4
      %s16 = int_to_ptr.vmem [resolvable:$true] %s15
      %21 = dma.hbm_to_vmem [thread:$0]  %s0, 256, %s16, [#allocation3], 128, 128, 8
    $region5: #{tpu_custom_call.1} parent=1 // pred_fallthru
      _
    // Predicated region
    $region6: #{tpu_custom_call.1} parent=1 // pred_check
      _
    $region7: #{tpu_custom_call.1} parent=1 // pred_check_branch
      %23 = sbr.rel (0) target = $region9
    $region8: #{tpu_custom_call.1} parent=1 // pred_region
      %s25 = ssub.s32 256, 256
      %26 = vsyncadd [#allocation6], %s25
      %s27 = sshll.u32 [#allocation5], 4
      %s28 = int_to_ptr.vmem [resolvable:$true] %s27
      %33 = dma.hbm_to_vmem [thread:$0]  %s1, 256, %s28, [#allocation6], 128, 128, 8
    $region9: #{tpu_custom_call.1} parent=1 // pred_fallthru
      _
    // Predicated region
    $region10: #{tpu_custom_call.1} parent=1 // pred_check
      _
    $region11: #{tpu_custom_call.1} parent=1 // pred_check_branch
      %35 = sbr.rel (0) target = $region13
    $region12: #{tpu_custom_call.1} parent=1 // pred_region
      %36 = dma.done [#allocation3], 256
    $region13: #{tpu_custom_call.1} parent=1 // pred_fallthru
      _
    // Predicated region
    $region14: #{tpu_custom_call.1} parent=1 // pred_check
      _
    $region15: #{tpu_custom_call.1} parent=1 // pred_check_branch
      %38 = sbr.rel (0) target = $region17
    $region16: #{tpu_custom_call.1} parent=1 // pred_region
      %39 = dma.done [#allocation6], 256
    $region17: #{tpu_custom_call.1} parent=1 // pred_fallthru
      _
    %v40 = vld [vmem:[#allocation2] sm:$0xff]
    %v41 = vld [vmem:[#allocation2 + $0x8] sm:$0xff]
    %v42 = vld [vmem:[#allocation5] sm:$0xff]
    %v43 = vld [vmem:[#allocation5 + $0x8] sm:$0xff]
    %v44 = vtanh.pop %v40
    %v45 = vtanh.pop %v41
    %v46 = vtanh.pop %v42
    %v47 = vtanh.pop %v43
    %v48 = vsub.f32 %v44, %v46
    %v49 = vsub.f32 %v45, %v47
    %v50 = vand.u32 2147483647, %v48
    %v51 = vand.u32 2147483647, %v49
    %v52 = vadd.f32 %v50, %v51
    %53 = vst [vmem:[#allocation7] sm:$0xff] %v52
    // Predicated region
    $region18: #{tpu_custom_call.1} parent=1 // pred_check
      _
    $region19: #{tpu_custom_call.1} parent=1 // pred_check_branch
      %55 = sbr.rel (0) target = $region21
    $region20: #{tpu_custom_call.1} parent=1 // pred_region
      %s57 = ssub.s32 128, 128
      %58 = vsyncadd [#allocation4], %s57
      %s60 = sshll.u32 [#allocation7], 4
      %s61 = int_to_ptr.vmem [resolvable:$true] %s60
      %63 = dma.vmem_to_hbm [thread:$0]  %s61, 128, %s2, [#allocation4]
    $region21: #{tpu_custom_call.1} parent=1 // pred_fallthru
      _
    // Predicated region
    $region22: #{tpu_custom_call.1} parent=1 // pred_check
      _
    $region23: #{tpu_custom_call.1} parent=1 // pred_check_branch
      %65 = sbr.rel (0) target = $region25
    $region24: #{tpu_custom_call.1} parent=1 // pred_region
      %66 = dma.done [#allocation4], 128
    $region25: #{tpu_custom_call.1} parent=1 // pred_fallthru
      _
    %67 = vsyncpa [#allocation3], 1
    %68 = vsyncpa [#allocation6], 1
    %69 = vsyncpa [#allocation4], 1

</llo_original>
